<compile_context>
chip_gen: v7x
topology: tpu7x:2x2x1
jax: 0.10.0
libtpu: 0.0.40
codegen_flags: <defaults>
</compile_context>

<pallas_src>
import jax
import jax.numpy as jnp
from jax.experimental import pallas as pl
from jax.experimental.pallas import tpu as pltpu

H = 32       # hidden width of the module
OP = 8       # lane-padded fused-head output width (cols 0..3 action, col 4 value)
HOUT = 5     # useful fused-head columns


def _cdiv(a, b):
    return (a + b - 1) // b


def _round_up(x, m):
    return _cdiv(x, m) * m


def _policy_kernel(x_ref, w1_ref, b1_ref, w2_ref, b2_ref, wh_ref, bh_ref,
                   out_ref):
    x = x_ref[...]                                   # [TB, 2]
    # fc1 (K=2): VPU broadcast-FMAs instead of an almost-empty MXU push.
    h1 = (x[:, 0:1] * w1_ref[0:1, :]                 # [TB,1]*[1,H] -> [TB,H]
          + x[:, 1:2] * w1_ref[1:2, :]
          + b1_ref[...])
    # fc2: [TB,32] @ [32,32] on the MXU (no padded contraction rows).
    h2 = jnp.dot(h1, w2_ref[...],
                 preferred_element_type=jnp.float32) + b2_ref[...]
    # fused heads: [TB,32] @ [32,8] -> single narrow output slab.
    out_ref[...] = (jnp.dot(h2, wh_ref[...],
                            preferred_element_type=jnp.float32)
                    + bh_ref[...]).astype(out_ref.dtype)


def pack_params(params):
    """Fuse the two heads into one (32, 8) weight / (1, 8) bias (zero-padded).

    Contraction dims are left unpadded; only the fused head's output lane dim
    is padded from 5 -> 8 (exact: padding columns are all-zero and sliced off).
    """
    w1, b1, w2, b2, wa, ba, wv, bv = params
    f32 = jnp.float32
    wh = jnp.concatenate([wa, wv], axis=1)               # [32, 5]
    bh = jnp.concatenate([ba, bv], axis=1)               # [1, 5]
    whp = jnp.zeros((H, OP), f32).at[:, :HOUT].set(wh)   # [32, 8]
    bhp = jnp.zeros((1, OP), f32).at[:, :HOUT].set(bh)   # [1, 8]
    return (w1.astype(f32), b1.astype(f32),
            w2.astype(f32), b2.astype(f32), whp, bhp)


def _choose_tb(B, *, cap=4096, min_steps=2):
    """Row tile: >= min_steps grid steps (2 TCs on v7x), <= cap rows, and
    sized from ceil(B / n_steps) so Bp - B padding waste stays small."""
    n_steps = max(min_steps, _cdiv(B, cap))
    tb = _round_up(_cdiv(B, n_steps), 8)
    return max(min(tb, cap), 8)


def policy_forward(x, packed_params, *, tb_cap=4096):
    """x: [B, 2] float32. Returns (action_probs [B,4], state_values [B,1]).

    `action_probs` are the raw action_head logits (no softmax), exactly as in
    the reference PyTorch module's forward().
    """
    w1, b1, w2, b2, whp, bhp = packed_params
    B = x.shape[0]

    TB = _choose_tb(B, cap=tb_cap)
    Bp = _round_up(B, TB)
    if Bp != B:
        x = jnp.pad(x, ((0, Bp - B), (0, 0)))
    # NOTE: padded rows carry bias-driven garbage values; they are sliced off
    # below and must never be consumed directly.

    resident = lambda a: pl.BlockSpec(a.shape, lambda i: (0,) * a.ndim)

    out = pl.pallas_call(
        _policy_kernel,
        grid=(Bp // TB,),
        in_specs=[
            pl.BlockSpec((TB, 2), lambda i: (i, 0)),   # x: tiled over rows
            resident(w1), resident(b1),
            resident(w2), resident(b2),
            resident(whp), resident(bhp),
        ],
        out_specs=pl.BlockSpec((TB, OP), lambda i: (i, 0)),
        out_shape=jax.ShapeDtypeStruct((Bp, OP), jnp.float32),
        compiler_params=pltpu.CompilerParams(
            dimension_semantics=("parallel",)),   # shards rows across v7x's 2 TCs
    )(x, w1, b1, w2, b2, whp, bhp)

    action_logits = out[:B, 0:4]
    state_values = out[:B, 4:5]
    return action_logits, state_values


def init_params(key):
    """Deterministic synthetic params. Linear(in,out) stored as W:[in,out], b:[1,out]."""
    ks = jax.random.split(key, 8)

    def linear(kw, kb, fan_in, fan_out):
        bound = 1.0 / jnp.sqrt(fan_in)
        w = jax.random.uniform(kw, (fan_in, fan_out), jnp.float32, -bound, bound)
        b = jax.random.uniform(kb, (1, fan_out), jnp.float32, -bound, bound)
        return w, b

    w1, b1 = linear(ks[0], ks[1], 2, 32)    # fc1
    w2, b2 = linear(ks[2], ks[3], 32, 32)   # fc2
    wa, ba = linear(ks[4], ks[5], 32, 4)    # action_head
    wv, bv = linear(ks[6], ks[7], 32, 1)    # value_head
    return (w1, b1, w2, b2, wa, ba, wv, bv)


def policy_ref(x, params):
    """Pure-JAX reference for correctness check (matches the PyTorch forward)."""
    w1, b1, w2, b2, wa, ba, wv, bv = params
    h = x @ w1 + b1
    h = h @ w2 + b2
    return h @ wa + ba, h @ wv + bv


if __name__ == "__main__":
    key = jax.random.PRNGKey(0)
    k_param, k_x = jax.random.split(key)
    raw_params = init_params(k_param)
    packed = pack_params(raw_params)

    B = 8
    x = jax.random.normal(k_x, (B, 2), jnp.float32)

    act, val = policy_forward(x, packed)
    act = jax.block_until_ready(act)
    val = jax.block_until_ready(val)

    act_ref, val_ref = policy_ref(x, raw_params)
    assert act.shape == (B, 4) and val.shape == (B, 1)
    assert jnp.allclose(act, act_ref, atol=1e-5, rtol=1e-5)
    assert jnp.allclose(val, val_ref, atol=1e-5, rtol=1e-5)

    print("KERNEL_OK")
</pallas_src>

<mosaic_0001>
module attributes {stable_mosaic.version = 11 : i64} {
  func.func @_policy_kernel(%arg0: i32, %arg1: memref<8x2xf32, #tpu.memory_space<vmem>>, %arg2: memref<2x32xf32, #tpu.memory_space<vmem>>, %arg3: memref<1x32xf32, #tpu.memory_space<vmem>>, %arg4: memref<32x32xf32, #tpu.memory_space<vmem>>, %arg5: memref<1x32xf32, #tpu.memory_space<vmem>>, %arg6: memref<32x8xf32, #tpu.memory_space<vmem>>, %arg7: memref<1x8xf32, #tpu.memory_space<vmem>>, %arg8: memref<8x8xf32, #tpu.memory_space<vmem>>) attributes {dimension_semantics = [#tpu.dimension_semantics<parallel>], iteration_bounds = array<i64: 1>, scalar_prefetch = 0 : i64, scratch_operands = 0 : i64, tpu.core_type = #tpu.core_type<tc>, window_params = [{transform_indices = @transform_0, window_bounds = array<i64: 8, 2>}, {pipeline_mode = #tpu.pipeline_mode<synchronous>, transform_indices = @transform_1, window_bounds = array<i64: 2, 32>}, {pipeline_mode = #tpu.pipeline_mode<synchronous>, transform_indices = @transform_2, window_bounds = array<i64: 1, 32>}, {pipeline_mode = #tpu.pipeline_mode<synchronous>, transform_indices = @transform_3, window_bounds = array<i64: 32, 32>}, {pipeline_mode = #tpu.pipeline_mode<synchronous>, transform_indices = @transform_4, window_bounds = array<i64: 1, 32>}, {pipeline_mode = #tpu.pipeline_mode<synchronous>, transform_indices = @transform_5, window_bounds = array<i64: 32, 8>}, {pipeline_mode = #tpu.pipeline_mode<synchronous>, transform_indices = @transform_6, window_bounds = array<i64: 1, 8>}, {transform_indices = @transform_7, window_bounds = array<i64: 8, 8>}]} {
    %c0 = arith.constant 0 : index
    %c0_0 = arith.constant 0 : index
    %0 = vector.load %arg1[%c0, %c0_0] : memref<8x2xf32, #tpu.memory_space<vmem>>, vector<8x2xf32>
    %1 = vector.extract_strided_slice %0 {offsets = [0, 0], sizes = [8, 1], strides = [1, 1]} : vector<8x2xf32> to vector<8x1xf32>
    %c0_1 = arith.constant 0 : index
    %c0_2 = arith.constant 0 : index
    %2 = vector.load %arg2[%c0_1, %c0_2] : memref<2x32xf32, #tpu.memory_space<vmem>>, vector<1x32xf32>
    %3 = vector.broadcast %1 : vector<8x1xf32> to vector<8x32xf32>
    %4 = vector.broadcast %2 : vector<1x32xf32> to vector<8x32xf32>
    %5 = arith.mulf %3, %4 : vector<8x32xf32>
    %6 = vector.extract_strided_slice %0 {offsets = [0, 1], sizes = [8, 1], strides = [1, 1]} : vector<8x2xf32> to vector<8x1xf32>
    %c1 = arith.constant 1 : index
    %c0_3 = arith.constant 0 : index
    %7 = vector.load %arg2[%c1, %c0_3] : memref<2x32xf32, #tpu.memory_space<vmem>>, vector<1x32xf32>
    %8 = vector.broadcast %6 : vector<8x1xf32> to vector<8x32xf32>
    %9 = vector.broadcast %7 : vector<1x32xf32> to vector<8x32xf32>
    %10 = arith.mulf %8, %9 : vector<8x32xf32>
    %11 = arith.addf %5, %10 : vector<8x32xf32>
    %c0_4 = arith.constant 0 : index
    %c0_5 = arith.constant 0 : index
    %12 = vector.load %arg3[%c0_4, %c0_5] : memref<1x32xf32, #tpu.memory_space<vmem>>, vector<1x32xf32>
    %13 = vector.broadcast %12 : vector<1x32xf32> to vector<8x32xf32>
    %14 = arith.addf %11, %13 : vector<8x32xf32>
    %c0_6 = arith.constant 0 : index
    %c0_7 = arith.constant 0 : index
    %15 = vector.load %arg4[%c0_6, %c0_7] : memref<32x32xf32, #tpu.memory_space<vmem>>, vector<32x32xf32>
    %cst = arith.constant dense<0.000000e+00> : vector<8x32xf32>
    %16 = tpu.matmul %14, %15, %cst {dimension_numbers = #tpu.dot_dimension_numbers<[1], [0], [0], [1], [0, 0, 1, 1], [], []>} : vector<8x32xf32>, vector<32x32xf32>, vector<8x32xf32> -> vector<8x32xf32>
    %c0_8 = arith.constant 0 : index
    %c0_9 = arith.constant 0 : index
    %17 = vector.load %arg5[%c0_8, %c0_9] : memref<1x32xf32, #tpu.memory_space<vmem>>, vector<1x32xf32>
    %18 = vector.broadcast %17 : vector<1x32xf32> to vector<8x32xf32>
    %19 = arith.addf %16, %18 : vector<8x32xf32>
    %c0_10 = arith.constant 0 : index
    %c0_11 = arith.constant 0 : index
    %20 = vector.load %arg6[%c0_10, %c0_11] : memref<32x8xf32, #tpu.memory_space<vmem>>, vector<32x8xf32>
    %cst_12 = arith.constant dense<0.000000e+00> : vector<8x8xf32>
    %21 = tpu.matmul %19, %20, %cst_12 {dimension_numbers = #tpu.dot_dimension_numbers<[1], [0], [0], [1], [0, 0, 1, 1], [], []>} : vector<8x32xf32>, vector<32x8xf32>, vector<8x8xf32> -> vector<8x8xf32>
    %c0_13 = arith.constant 0 : index
    %c0_14 = arith.constant 0 : index
    %22 = vector.load %arg7[%c0_13, %c0_14] : memref<1x8xf32, #tpu.memory_space<vmem>>, vector<1x8xf32>
    %23 = vector.broadcast %22 : vector<1x8xf32> to vector<8x8xf32>
    %24 = arith.addf %21, %23 : vector<8x8xf32>
    %c0_15 = arith.constant 0 : index
    %c0_16 = arith.constant 0 : index
    %25 = vector.load %arg8[%c0_15, %c0_16] : memref<8x8xf32, #tpu.memory_space<vmem>>, vector<8x8xf32>
    tpu.vector_store %arg8[%c0_15, %c0_16], %24 {strides = array<i32>} : memref<8x8xf32, #tpu.memory_space<vmem>>, vector<8x8xf32>,
    return
  }
  func.func @transform_0(%arg0: i32) -> (i32, i32) {
    %c0_i32 = arith.constant 0 : i32
    %c0_i32_0 = arith.constant 0 : i32
    return %arg0, %c0_i32 : i32, i32
  }
  func.func @transform_1(%arg0: i32) -> (i32, i32) {
    %c0_i32 = arith.constant 0 : i32
    %c0_i32_0 = arith.constant 0 : i32
    %c0_i32_1 = arith.constant 0 : i32
    return %c0_i32, %c0_i32_0 : i32, i32
  }
  func.func @transform_2(%arg0: i32) -> (i32, i32) {
    %c0_i32 = arith.constant 0 : i32
    %c0_i32_0 = arith.constant 0 : i32
    %c0_i32_1 = arith.constant 0 : i32
    return %c0_i32, %c0_i32_0 : i32, i32
  }
  func.func @transform_3(%arg0: i32) -> (i32, i32) {
    %c0_i32 = arith.constant 0 : i32
    %c0_i32_0 = arith.constant 0 : i32
    %c0_i32_1 = arith.constant 0 : i32
    return %c0_i32, %c0_i32_0 : i32, i32
  }
  func.func @transform_4(%arg0: i32) -> (i32, i32) {
    %c0_i32 = arith.constant 0 : i32
    %c0_i32_0 = arith.constant 0 : i32
    %c0_i32_1 = arith.constant 0 : i32
    return %c0_i32, %c0_i32_0 : i32, i32
  }
  func.func @transform_5(%arg0: i32) -> (i32, i32) {
    %c0_i32 = arith.constant 0 : i32
    %c0_i32_0 = arith.constant 0 : i32
    %c0_i32_1 = arith.constant 0 : i32
    return %c0_i32, %c0_i32_0 : i32, i32
  }
  func.func @transform_6(%arg0: i32) -> (i32, i32) {
    %c0_i32 = arith.constant 0 : i32
    %c0_i32_0 = arith.constant 0 : i32
    %c0_i32_1 = arith.constant 0 : i32
    return %c0_i32, %c0_i32_0 : i32, i32
  }
  func.func @transform_7(%arg0: i32) -> (i32, i32) {
    %c0_i32 = arith.constant 0 : i32
    %c0_i32_0 = arith.constant 0 : i32
    return %arg0, %c0_i32 : i32, i32
  }
}

</mosaic_0001>

<llo_original>
// kernel: tpu_custom_call.1
$region0: #{tpu_custom_call.1}
  #allocation0 [shape = 'u32[]', space=smem, size = 0x4, offset = 0x4, fixed_abs, tag = 'smem constant byte address 0x4 - core index']
  #allocation1 [shape = 'u32[144,128]{1,0:T(1,128)}', space=vmem, size = 0x12000, scoped, tag = 'internal scratch']
  %s0 = inlined_call_operand.vmem [shape: f32[8,2], index: 0, kind: input, shape index: {}]
  %s1 = inlined_call_operand.vmem [shape: f32[2,32], index: 1, kind: input, shape index: {}]
  %s2 = inlined_call_operand.vmem [shape: f32[1,32], index: 2, kind: input, shape index: {}]
  %s3 = inlined_call_operand.vmem [shape: f32[32,32], index: 3, kind: input, shape index: {}]
  %s4 = inlined_call_operand.vmem [shape: f32[1,32], index: 4, kind: input, shape index: {}]
  %s5 = inlined_call_operand.vmem [shape: f32[32,8], index: 5, kind: input, shape index: {}]
  %s6 = inlined_call_operand.vmem [shape: f32[1,8], index: 6, kind: input, shape index: {}]
  %s7 = inlined_call_operand.hbm [shape: f32[8,8], index: 7, kind: output, shape index: {}]
  %s8 = sld [smem:[#allocation0]]
  $region38: #{tpu_custom_call.1} parent=0
    _
  %s10 = ssub.s32 1, %s8
  %s11 = scalar_select 0, %s10, %s8
  $region1: #{tpu_custom_call.1} parent=0
    #allocation2 [shape = 'u8[4096]{0}', space=vmem, size = 0x1000, scoped, tag = 'output window, operand 0, single buffered']
    #allocation3 [shape = 's32[1]{0}', space=sflag, size = 0x4, scoped, tag = 'scoped memory for tpu_custom_call.1']
    %12 = vsyncpa [#allocation3], 0
    // Predicated region
    $region2: #{tpu_custom_call.1} parent=1 // pred_check
      _
    $region3: #{tpu_custom_call.1} parent=1 // pred_check_branch
      %14 = sbr.rel (0) target = $region5
    $region4: #{tpu_custom_call.1} parent=1 // pred_region
      _
    $region5: #{tpu_custom_call.1} parent=1 // pred_fallthru
      _
    // Predicated region
    $region6: #{tpu_custom_call.1} parent=1 // pred_check
      _
    $region7: #{tpu_custom_call.1} parent=1 // pred_check_branch
      %16 = sbr.rel (0) target = $region9
    $region8: #{tpu_custom_call.1} parent=1 // pred_region
      _
    $region9: #{tpu_custom_call.1} parent=1 // pred_fallthru
      _
    // Predicated region
    $region10: #{tpu_custom_call.1} parent=1 // pred_check
      _
    $region11: #{tpu_custom_call.1} parent=1 // pred_check_branch
      %18 = sbr.rel (0) target = $region13
    $region12: #{tpu_custom_call.1} parent=1 // pred_region
      _
    $region13: #{tpu_custom_call.1} parent=1 // pred_fallthru
      _
    // Predicated region
    $region14: #{tpu_custom_call.1} parent=1 // pred_check
      _
    $region15: #{tpu_custom_call.1} parent=1 // pred_check_branch
      %20 = sbr.rel (0) target = $region17
    $region16: #{tpu_custom_call.1} parent=1 // pred_region
      _
    $region17: #{tpu_custom_call.1} parent=1 // pred_fallthru
      _
    // Predicated region
    $region18: #{tpu_custom_call.1} parent=1 // pred_check
      _
    $region19: #{tpu_custom_call.1} parent=1 // pred_check_branch
      %22 = sbr.rel (0) target = $region21
    $region20: #{tpu_custom_call.1} parent=1 // pred_region
      _
    $region21: #{tpu_custom_call.1} parent=1 // pred_fallthru
      _
    // Predicated region
    $region22: #{tpu_custom_call.1} parent=1 // pred_check
      _
    $region23: #{tpu_custom_call.1} parent=1 // pred_check_branch
      %24 = sbr.rel (0) target = $region25
    $region24: #{tpu_custom_call.1} parent=1 // pred_region
      _
    $region25: #{tpu_custom_call.1} parent=1 // pred_fallthru
      _
    // Predicated region
    $region26: #{tpu_custom_call.1} parent=1 // pred_check
      _
    $region27: #{tpu_custom_call.1} parent=1 // pred_check_branch
      %26 = sbr.rel (0) target = $region29
    $region28: #{tpu_custom_call.1} parent=1 // pred_region
      _
    $region29: #{tpu_custom_call.1} parent=1 // pred_fallthru
      _
    %v27 = vld [vmem:[%s0] sm:$0xff]
    %v28 = vld [vmem:[%s1] sm:$0x1]
    %30 = vset.pattern.permute.xlu0 0
    %31 = vperm.xlu0 %30, %v27
    %v32 = vpop.permute.xlu0 %31
    %v34 = vlaneseq
    %v35 = vshrl.u32 %v34, 7
    %v36 = vsub.s32 0, %v35
    %v37 = vrot.slane %v28, %v36
    %v38 = vmul.f32 %v32, %v37
    %v39 = vld [vmem:[%s1 + $0x1] sm:$0x1]
    %40 = vset.pattern.permute.xlu0 1
    %41 = vperm.xlu0 %40, %v27
    %v42 = vpop.permute.xlu0 %41
    %v44 = vlaneseq
    %v45 = vshrl.u32 %v44, 7
    %v46 = vsub.s32 0, %v45
    %v47 = vrot.slane %v39, %v46
    %v48 = vmul.f32 %v42, %v47
    %v49 = vadd.f32 %v38, %v48
    %v50 = vld [vmem:[%s2] sm:$0x1]
    %v52 = vlaneseq
    %v53 = vshrl.u32 %v52, 7
    %v54 = vsub.s32 0, %v53
    %v55 = vrot.slane %v50, %v54
    %v57 = vadd.f32 %v49, %v55
    %v58 = vld [vmem:[%s3] sm:$0xff]
    %v59 = vld [vmem:[%s3 + $0x8] sm:$0xff]
    %v60 = vld [vmem:[%s3 + $0x10] sm:$0xff]
    %v61 = vld [vmem:[%s3 + $0x18] sm:$0xff]
    %v62 = vld [vmem:[%s4] sm:$0x1]
    %v64 = vlaneseq
    %v65 = vshrl.u32 %v64, 7
    %v66 = vsub.s32 0, %v65
    %v67 = vrot.slane %v62, %v66
    %vm69 = vcmask 261120
    %v71 = vsel %vm69, %v57, 0
    %73 = vmatprep.subr.mxu0 0.0
    %74 = vmatpush1.msra.mxu0 %v58
    %75 = vmatprep.subr.mxu0 0.0
    %76 = vmatpush1.msra.mxu0 %v59
    %77 = vmatprep.subr.mxu0 0.0
    %78 = vmatpush1.msra.mxu0 %v60
    %79 = vmatprep.subr.mxu0 0.0
    %80 = vmatpush1.msra.mxu0 %v61
    %81 = vmatprep.subr.mxu0 0.0
    %82 = vmatpush1.msra.mxu0 0.0
    %83 = vmatprep.subr.mxu0 0.0
    %84 = vmatpush1.msra.mxu0 0.0
    %85 = vmatprep.subr.mxu0 0.0
    %86 = vmatpush1.msra.mxu0 0.0
    %87 = vmatprep.subr.mxu0 0.0
    %88 = vmatpush1.msra.mxu0 0.0
    %89 = vmatprep.subr.mxu0 0.0
    %90 = vmatpush1.msra.mxu0 0.0
    %91 = vmatprep.subr.mxu0 0.0
    %92 = vmatpush1.msra.mxu0 0.0
    %93 = vmatprep.subr.mxu0 0.0
    %94 = vmatpush1.msra.mxu0 0.0
    %95 = vmatprep.subr.mxu0 0.0
    %96 = vmatpush1.msra.mxu0 0.0
    %97 = vmatprep.subr.mxu0 0.0
    %98 = vmatpush1.msra.mxu0 0.0
    %99 = vmatprep.subr.mxu0 0.0
    %100 = vmatpush1.msra.mxu0 0.0
    %101 = vmatprep.subr.mxu0 0.0
    %102 = vmatpush1.msra.mxu0 0.0
    %103 = vmatprep.subr.mxu0 0.0
    %104 = vmatpush1.msra.mxu0 0.0
    %105 = vmatprep.subr.mxu0 0.0
    %106 = vmatpush1.msra.mxu0 0.0
    %107 = vmatprep.subr.mxu0 0.0
    %108 = vmatpush1.msra.mxu0 0.0
    %109 = vmatprep.subr.mxu0 0.0
    %110 = vmatpush1.msra.mxu0 0.0
    %111 = vmatprep.subr.mxu0 0.0
    %112 = vmatpush1.msra.mxu0 0.0
    %113 = vmatprep.subr.mxu0 0.0
    %114 = vmatpush1.msra.mxu0 0.0
    %115 = vmatprep.subr.mxu0 0.0
    %116 = vmatpush1.msra.mxu0 0.0
    %117 = vmatprep.subr.mxu0 0.0
    %118 = vmatpush1.msra.mxu0 0.0
    %119 = vmatprep.subr.mxu0 0.0
    %120 = vmatpush1.msra.mxu0 0.0
    %121 = vmatprep.subr.mxu0 0.0
    %122 = vmatpush1.msra.mxu0 0.0
    %123 = vmatprep.subr.mxu0 0.0
    %124 = vmatpush1.msra.mxu0 0.0
    %125 = vmatprep.subr.mxu0 0.0
    %126 = vmatpush1.msra.mxu0 0.0
    %127 = vmatprep.subr.mxu0 0.0
    %128 = vmatpush1.msra.mxu0 0.0
    %129 = vmatprep.subr.mxu0 0.0
    %130 = vmatpush1.msra.mxu0 0.0
    %131 = vmatprep.subr.mxu0 0.0
    %132 = vmatpush1.msra.mxu0 0.0
    %133 = vmatprep.subr.mxu0 0.0
    %134 = vmatpush1.msra.mxu0 0.0
    %135 = vmatprep.subr.mxu0 0.0
    %136 = vmatpush1.msra.mxu0 0.0
    %137 = vmatprep.mubr.f32.mxu0 0.0
    %138 = vmatmul.mubr.f32.gmra.mrb[0].mxu0 %v71
    %v139 = vpop.f32.mrb[0].mxu0
    %v140 = vadd.f32 %v67, %v139
    %v141 = vpop.f32.mrb[0].mxu0
    %142 = vdwg.mxu0
    %v143 = vld [vmem:[%s5] sm:$0xff]
    %v144 = vld [vmem:[%s5 + $0x8] sm:$0xff]
    %v145 = vld [vmem:[%s5 + $0x10] sm:$0xff]
    %v146 = vld [vmem:[%s5 + $0x18] sm:$0xff]
    %v147 = vld [vmem:[%s6] sm:$0x1]
    %v149 = vlaneseq
    %v150 = vshrl.u32 %v149, 7
    %v151 = vsub.s32 0, %v150
    %v152 = vrot.slane %v147, %v151
    %v155 = vsel %vm69, %v140, 0
    %157 = vmatprep.subr.mxu0 0.0
    %158 = vmatpush1.msra.mxu0 %v143
    %159 = vmatprep.subr.mxu0 0.0
    %160 = vmatpush1.msra.mxu0 %v144
    %161 = vmatprep.subr.mxu0 0.0
    %162 = vmatpush1.msra.mxu0 %v145
    %163 = vmatprep.subr.mxu0 0.0
    %164 = vmatpush1.msra.mxu0 %v146
    %165 = vmatprep.subr.mxu0 0.0
    %166 = vmatpush1.msra.mxu0 0.0
    %167 = vmatprep.subr.mxu0 0.0
    %168 = vmatpush1.msra.mxu0 0.0
    %169 = vmatprep.subr.mxu0 0.0
    %170 = vmatpush1.msra.mxu0 0.0
    %171 = vmatprep.subr.mxu0 0.0
    %172 = vmatpush1.msra.mxu0 0.0
    %173 = vmatprep.subr.mxu0 0.0
    %174 = vmatpush1.msra.mxu0 0.0
    %175 = vmatprep.subr.mxu0 0.0
    %176 = vmatpush1.msra.mxu0 0.0
    %177 = vmatprep.subr.mxu0 0.0
    %178 = vmatpush1.msra.mxu0 0.0
    %179 = vmatprep.subr.mxu0 0.0
    %180 = vmatpush1.msra.mxu0 0.0
    %181 = vmatprep.subr.mxu0 0.0
    %182 = vmatpush1.msra.mxu0 0.0
    %183 = vmatprep.subr.mxu0 0.0
    %184 = vmatpush1.msra.mxu0 0.0
    %185 = vmatprep.subr.mxu0 0.0
    %186 = vmatpush1.msra.mxu0 0.0
    %187 = vmatprep.subr.mxu0 0.0
    %188 = vmatpush1.msra.mxu0 0.0
    %189 = vmatprep.subr.mxu0 0.0
    %190 = vmatpush1.msra.mxu0 0.0
    %191 = vmatprep.subr.mxu0 0.0
    %192 = vmatpush1.msra.mxu0 0.0
    %193 = vmatprep.subr.mxu0 0.0
    %194 = vmatpush1.msra.mxu0 0.0
    %195 = vmatprep.subr.mxu0 0.0
    %196 = vmatpush1.msra.mxu0 0.0
    %197 = vmatprep.subr.mxu0 0.0
    %198 = vmatpush1.msra.mxu0 0.0
    %199 = vmatprep.subr.mxu0 0.0
    %200 = vmatpush1.msra.mxu0 0.0
    %201 = vmatprep.subr.mxu0 0.0
    %202 = vmatpush1.msra.mxu0 0.0
    %203 = vmatprep.subr.mxu0 0.0
    %204 = vmatpush1.msra.mxu0 0.0
    %205 = vmatprep.subr.mxu0 0.0
    %206 = vmatpush1.msra.mxu0 0.0
    %207 = vmatprep.subr.mxu0 0.0
    %208 = vmatpush1.msra.mxu0 0.0
    %209 = vmatprep.subr.mxu0 0.0
    %210 = vmatpush1.msra.mxu0 0.0
    %211 = vmatprep.subr.mxu0 0.0
    %212 = vmatpush1.msra.mxu0 0.0
    %213 = vmatprep.subr.mxu0 0.0
    %214 = vmatpush1.msra.mxu0 0.0
    %215 = vmatprep.subr.mxu0 0.0
    %216 = vmatpush1.msra.mxu0 0.0
    %217 = vmatprep.subr.mxu0 0.0
    %218 = vmatpush1.msra.mxu0 0.0
    %219 = vmatprep.subr.mxu0 0.0
    %220 = vmatpush1.msra.mxu0 0.0
    %221 = vmatprep.mubr.f32.mxu0 0.0
    %222 = vmatmul.mubr.f32.gmra.mrb[0].mxu0 %v155
    %v223 = vpop.f32.mrb[0].mxu0
    %v224 = vadd.f32 %v152, %v223
    %v225 = vpop.f32.mrb[0].mxu0
    %226 = vdwg.mxu0
    %vm227 = vcmask 64512
    %228 = vst.msk [vmem:[#allocation2] sm:$0xff] %vm227, %v224
    // Predicated region
    $region30: #{tpu_custom_call.1} parent=1 // pred_check
      _
    $region31: #{tpu_custom_call.1} parent=1 // pred_check_branch
      %230 = sbr.rel (0) target = $region33
    $region32: #{tpu_custom_call.1} parent=1 // pred_region
      %s232 = ssub.s32 128, 128
      %233 = vsyncadd [#allocation3], %s232
      %s235 = sshll.u32 [#allocation2], 4
      %s236 = int_to_ptr.vmem [resolvable:$true] %s235
      %238 = dma.vmem_to_hbm [thread:$0]  %s236, 128, %s7, [#allocation3]
    $region33: #{tpu_custom_call.1} parent=1 // pred_fallthru
      _
    // Predicated region
    $region34: #{tpu_custom_call.1} parent=1 // pred_check
      _
    $region35: #{tpu_custom_call.1} parent=1 // pred_check_branch
      %240 = sbr.rel (0) target = $region37
    $region36: #{tpu_custom_call.1} parent=1 // pred_region
      %241 = dma.done [#allocation3], 128
    $region37: #{tpu_custom_call.1} parent=1 // pred_fallthru
      _
    %242 = vsyncpa [#allocation3], 1

</llo_original>
